<compile_context>
chip_gen: v7x
topology: tpu7x:2x2x1
jax: 0.10.0
libtpu: 0.0.40
codegen_flags: <defaults>
</compile_context>

<pallas_src>
import math

import jax
import jax.numpy as jnp
from jax import lax
from jax.experimental import pallas as pl
from jax.experimental.pallas import tpu as pltpu

_NSLOTS = 8  # in-flight row DMAs for the token-table gather


def bert_embedding_kernel(ids_ref, segs_ref, tok_hbm_ref, seg_tab_ref, pe_ref,
                          out_ref, tok_buf, copy_sems):
    """One grid step == one tile of TR flattened (batch*seq) rows.

    ids_ref     : (B*S,)    int32  token ids, SMEM (scalar prefetch)
    segs_ref    : (TR, 1)   int32  segment labels for this tile (VMEM)
    tok_hbm_ref : (V, D)    f32    token embedding table, resident in HBM (pl.ANY)
    seg_tab_ref : (3, D)    f32    segment embedding table (VMEM)
    pe_ref      : (TR, D)   f32    sinusoidal positional rows for this tile (VMEM)
    out_ref     : (TR, D)   f32    output tile
    tok_buf     : (TR, D)   f32    VMEM scratch holding gathered token rows
    copy_sems   : (_NSLOTS,)       DMA semaphores for the windowed gather
    """
    t = pl.program_id(0)
    TR, D = out_ref.shape
    base = t * TR

    def row_copy(i, row):
        return pltpu.make_async_copy(
            tok_hbm_ref.at[pl.ds(row, 1)],     # (1, D) row in HBM
            tok_buf.at[pl.ds(i, 1)],           # (1, D) row in VMEM scratch
            copy_sems.at[i % _NSLOTS],
        )

    def start_copy(i):
        row_copy(i, ids_ref[base + i]).start()

    def wait_copy(i):
        row_copy(i, 0).wait()                  # wait only uses dst size + semaphore

    n_prime = min(_NSLOTS, TR)

    # Prime the DMA window.
    @pl.loop(0, n_prime)
    def _(i):
        start_copy(i)

    # Drain/refill: wait row i, then issue row i + n_prime into the freed slot.
    @pl.loop(0, TR)
    def _(i):
        wait_copy(i)

        @pl.when(i + n_prime < TR)
        def _():
            start_copy(i + n_prime)

    # Segment embedding: 3-row table -> two VPU selects (no MXU, no one-hot).
    segs = segs_ref[...]                       # (TR, 1) int32
    row0 = seg_tab_ref[0:1, :]                 # (1, D)
    row1 = seg_tab_ref[1:2, :]
    row2 = seg_tab_ref[2:3, :]
    seg_emb = jnp.where(segs == 0, row0, jnp.where(segs == 1, row1, row2))  # (TR, D)

    # TODO(synk): nn.Dropout(p=0.1) is identity in eval mode; training-mode dropout would
    # need pltpu.prng_seed / pltpu.prng_random_bits and is not reproduced here.
    out_ref[...] = (tok_buf[...] + pe_ref[...] + seg_emb).astype(out_ref.dtype)


def bert_embedding(sequence, segment_label, token_table, segment_table, pe,
                   rows_per_tile=None):
    """sequence, segment_label: (B, S) int; token_table: (V, D); segment_table: (3, D);
    pe: (max_len, D) sinusoidal buffer. Returns (B, S, D) float32."""
    B, S = sequence.shape
    V, D = token_table.shape
    N = B * S
    assert S % 8 == 0, "seq_len must be a multiple of 8 for TPU sublane tiling"

    if rows_per_tile is None:
        # Largest multiple-of-8 divisor of S that is <= 512: keeps the PE block index a simple
        # modulo and gives HBM-saturating row tiles at real BERT shapes (S=512 -> TR=512).
        rows_per_tile = 8
        for cand in range(8, min(S, 512) + 1, 8):
            if S % cand == 0:
                rows_per_tile = cand
    TR = rows_per_tile
    assert S % TR == 0
    pe_blocks = S // TR
    num_tiles = N // TR

    ids_flat = sequence.reshape(N).astype(jnp.int32)            # -> SMEM scalar prefetch
    segs_col = segment_label.reshape(N, 1).astype(jnp.int32)    # thin VMEM column
    tok_tab = token_table.astype(jnp.float32)                   # stays in HBM
    seg_tab = segment_table.astype(jnp.float32)
    pe_slice = pe[:S].astype(jnp.float32)

    grid_spec = pltpu.PrefetchScalarGridSpec(
        num_scalar_prefetch=1,
        grid=(num_tiles,),
        in_specs=[
            pl.BlockSpec((TR, 1), lambda t, ids: (t, 0)),               # segment labels
            pl.BlockSpec(memory_space=pl.ANY),                          # token table (HBM, DMA gather)
            pl.BlockSpec((3, D), lambda t, ids: (0, 0)),                # segment table
            pl.BlockSpec((TR, D), lambda t, ids: (t % pe_blocks, 0)),   # positional rows
        ],
        out_specs=pl.BlockSpec((TR, D), lambda t, ids: (t, 0)),
        scratch_shapes=[
            pltpu.VMEM((TR, D), jnp.float32),      # gathered token rows
            pltpu.SemaphoreType.DMA((_NSLOTS,)),   # windowed-gather semaphores
        ],
    )

    out = pl.pallas_call(
        bert_embedding_kernel,
        out_shape=jax.ShapeDtypeStruct((N, D), jnp.float32),
        grid_spec=grid_spec,
        compiler_params=pltpu.CompilerParams(dimension_semantics=("parallel",)),
    )(ids_flat, segs_col, tok_tab, seg_tab, pe_slice)

    # NOTE: for narrow D (< 128) the output store is lane-masked; at real BERT sizes (D=768)
    # it is lane-dense. Packing multiple rows per 128-lane store is left out for clarity.
    return out.reshape(B, S, D)


def make_sinusoidal_pe(max_len, d_model):
    """Matches BERT-pytorch PositionalEmbedding buffer construction."""
    position = jnp.arange(max_len, dtype=jnp.float32)[:, None]                 # (L, 1)
    div_term = jnp.exp(
        jnp.arange(0, d_model, 2, dtype=jnp.float32) * -(math.log(10000.0) / d_model)
    )                                                                           # (D/2,)
    pe = jnp.zeros((max_len, d_model), jnp.float32)
    pe = pe.at[:, 0::2].set(jnp.sin(position * div_term))
    pe = pe.at[:, 1::2].set(jnp.cos(position * div_term))
    return pe


if __name__ == "__main__":
    # Small deterministic setup consistent with BERTEmbedding(vocab_size, embed_size,
    # seq_mode='two', abs_position_embed=True), run in eval mode (dropout = identity).
    vocab_size = 64
    embed_size = 32
    batch, seq_len = 2, 8

    key = jax.random.PRNGKey(0)
    k_tok, k_seg, k_ids, k_lbl = jax.random.split(key, 4)

    token_table = jax.random.normal(k_tok, (vocab_size, embed_size), dtype=jnp.float32)
    segment_table = jax.random.normal(k_seg, (3, embed_size), dtype=jnp.float32)
    pe = make_sinusoidal_pe(512, embed_size)

    sequence = jax.random.randint(k_ids, (batch, seq_len), 0, vocab_size, dtype=jnp.int32)
    segment_label = jax.random.randint(k_lbl, (batch, seq_len), 1, 3, dtype=jnp.int32)  # sent_A:1, sent_B:2

    out = bert_embedding(sequence, segment_label, token_table, segment_table, pe)
    out = jax.block_until_ready(out)

    # Pure-JAX reference of the PyTorch forward (eval mode).
    ref = token_table[sequence] + pe[:seq_len][None, :, :] + segment_table[segment_label]
    assert out.shape == (batch, seq_len, embed_size)
    assert jnp.allclose(out, ref, atol=1e-5, rtol=1e-5), "mismatch vs reference"

    print("KERNEL_OK")
</pallas_src>

<mosaic_0001>
module attributes {stable_mosaic.version = 11 : i64} {
  func.func @bert_embedding_kernel(%arg0: i32, %arg1: memref<16xi32, #tpu.memory_space<smem>>, %arg2: memref<8x1xi32, #tpu.memory_space<vmem>>, %arg3: memref<64x32xf32, #tpu.memory_space<any>>, %arg4: memref<3x32xf32, #tpu.memory_space<vmem>>, %arg5: memref<8x32xf32, #tpu.memory_space<vmem>>, %arg6: memref<8x32xf32, #tpu.memory_space<vmem>>, %arg7: memref<8x32xf32, #tpu.memory_space<vmem>>, %arg8: memref<8x!tpu.dma_semaphore, #tpu.memory_space<semaphore_mem>>) attributes {dimension_semantics = [#tpu.dimension_semantics<parallel>], iteration_bounds = array<i64: 2>, scalar_prefetch = 1 : i64, scratch_operands = 2 : i64, tpu.core_type = #tpu.core_type<tc>, window_params = [{transform_indices = @transform_0, window_bounds = array<i64: 8, 1>}, {}, {pipeline_mode = #tpu.pipeline_mode<synchronous>, transform_indices = @transform_2, window_bounds = array<i64: 3, 32>}, {transform_indices = @transform_3, window_bounds = array<i64: 8, 32>}, {transform_indices = @transform_4, window_bounds = array<i64: 8, 32>}]} {
    %c8_i32 = arith.constant 8 : i32
    %0 = arith.muli %arg0, %c8_i32 : i32
    %c0_i32 = arith.constant 0 : i32
    %c8_i32_0 = arith.constant 8 : i32
    %1 = arith.addi %c0_i32, %c8_i32_0 : i32
    %c1_i32 = arith.constant 1 : i32
    scf.for %arg9 = %c0_i32 to %1 step %c1_i32  : i32 {
      %c1_i32_19 = arith.constant 1 : i32
      %28 = arith.muli %arg9, %c1_i32_19 : i32
      %c0_i32_20 = arith.constant 0 : i32
      %29 = arith.addi %c0_i32_20, %28 : i32
      %30 = arith.addi %0, %29 : i32
      %31 = arith.index_cast %30 : i32 to index
      %32 = memref.load %arg1[%31] : memref<16xi32, #tpu.memory_space<smem>>
      %c8_i32_21 = arith.constant 8 : i32
      %c0_i32_22 = arith.constant 0 : i32
      %33 = arith.cmpi eq, %c8_i32_21, %c0_i32_22 : i32
      %c1_i32_23 = arith.constant 1 : i32
      %34 = arith.select %33, %c1_i32_23, %c8_i32_21 : i32
      %35 = arith.remsi %29, %34 : i32
      %c0_i32_24 = arith.constant 0 : i32
      %36 = arith.cmpi ne, %35, %c0_i32_24 : i32
      %c0_i32_25 = arith.constant 0 : i32
      %37 = arith.cmpi slt, %35, %c0_i32_25 : i32
      %c0_i32_26 = arith.constant 0 : i32
      %38 = arith.cmpi slt, %34, %c0_i32_26 : i32
      %39 = arith.xori %37, %38 : i1
      %40 = arith.andi %39, %36 : i1
      %41 = arith.addi %35, %34 : i32
      %42 = arith.select %40, %41, %35 : i32
      %c0_i32_27 = arith.constant 0 : i32
      %43 = tpu.memref_slice %arg3[%32, %c0_i32_27] : memref<64x32xf32, #tpu.memory_space<any>> -> memref<1x32xf32, #tpu.memory_space<any>>
      %c0_i32_28 = arith.constant 0 : i32
      %44 = tpu.memref_slice %arg7[%29, %c0_i32_28] : memref<8x32xf32, #tpu.memory_space<vmem>> -> memref<1x32xf32, #tpu.memory_space<vmem>>
      %45 = tpu.memref_slice %arg8[%42] : memref<8x!tpu.dma_semaphore, #tpu.memory_space<semaphore_mem>> -> memref<1x!tpu.dma_semaphore, #tpu.memory_space<semaphore_mem>>
      %46 = tpu.memref_squeeze %45 : memref<1x!tpu.dma_semaphore, #tpu.memory_space<semaphore_mem>> -> memref<!tpu.dma_semaphore, #tpu.memory_space<semaphore_mem>>
      tpu.enqueue_dma source(%43 : memref<1x32xf32, #tpu.memory_space<any>>) target(%44 : memref<1x32xf32, #tpu.memory_space<vmem>>) target_semaphore(%46 : memref<!tpu.dma_semaphore, #tpu.memory_space<semaphore_mem>>)
    }
    %c8_i32_1 = arith.constant 8 : i32
    %c0_i32_2 = arith.constant 0 : i32
    %c8_i32_3 = arith.constant 8 : i32
    %2 = arith.addi %c0_i32_2, %c8_i32_3 : i32
    %c1_i32_4 = arith.constant 1 : i32
    scf.for %arg9 = %c0_i32_2 to %2 step %c1_i32_4  : i32 {
      %c1_i32_19 = arith.constant 1 : i32
      %28 = arith.muli %arg9, %c1_i32_19 : i32
      %c0_i32_20 = arith.constant 0 : i32
      %29 = arith.addi %c0_i32_20, %28 : i32
      %c8_i32_21 = arith.constant 8 : i32
      %c0_i32_22 = arith.constant 0 : i32
      %30 = arith.cmpi eq, %c8_i32_21, %c0_i32_22 : i32
      %c1_i32_23 = arith.constant 1 : i32
      %31 = arith.select %30, %c1_i32_23, %c8_i32_21 : i32
      %32 = arith.remsi %29, %31 : i32
      %c0_i32_24 = arith.constant 0 : i32
      %33 = arith.cmpi ne, %32, %c0_i32_24 : i32
      %c0_i32_25 = arith.constant 0 : i32
      %34 = arith.cmpi slt, %32, %c0_i32_25 : i32
      %c0_i32_26 = arith.constant 0 : i32
      %35 = arith.cmpi slt, %31, %c0_i32_26 : i32
      %36 = arith.xori %34, %35 : i1
      %37 = arith.andi %36, %33 : i1
      %38 = arith.addi %32, %31 : i32
      %39 = arith.select %37, %38, %32 : i32
      %c0_i32_27 = arith.constant 0 : i32
      %c0_i32_28 = arith.constant 0 : i32
      %40 = tpu.memref_slice %arg3[%c0_i32_27, %c0_i32_28] : memref<64x32xf32, #tpu.memory_space<any>> -> memref<1x32xf32, #tpu.memory_space<any>>
      %c0_i32_29 = arith.constant 0 : i32
      %41 = tpu.memref_slice %arg7[%29, %c0_i32_29] : memref<8x32xf32, #tpu.memory_space<vmem>> -> memref<1x32xf32, #tpu.memory_space<vmem>>
      %42 = tpu.memref_slice %arg8[%39] : memref<8x!tpu.dma_semaphore, #tpu.memory_space<semaphore_mem>> -> memref<1x!tpu.dma_semaphore, #tpu.memory_space<semaphore_mem>>
      %43 = tpu.memref_squeeze %42 : memref<1x!tpu.dma_semaphore, #tpu.memory_space<semaphore_mem>> -> memref<!tpu.dma_semaphore, #tpu.memory_space<semaphore_mem>>
      tpu.wait_dma2 semaphore(%43 : memref<!tpu.dma_semaphore, #tpu.memory_space<semaphore_mem>>) src(%40 : memref<1x32xf32, #tpu.memory_space<any>>) dst(%41 : memref<1x32xf32, #tpu.memory_space<vmem>>)
      %c8_i32_30 = arith.constant 8 : i32
      %44 = arith.addi %29, %c8_i32_30 : i32
      %c8_i32_31 = arith.constant 8 : i32
      %45 = arith.cmpi slt, %44, %c8_i32_31 : i32
      %46 = arith.extui %45 : i1 to i32
      %c0_i32_32 = arith.constant 0 : i32
      %47 = arith.cmpi ne, %46, %c0_i32_32 : i32
      scf.if %47 {
        %c8_i32_33 = arith.constant 8 : i32
        %48 = arith.addi %29, %c8_i32_33 : i32
        %49 = arith.addi %0, %48 : i32
        %50 = arith.index_cast %49 : i32 to index
        %51 = memref.load %arg1[%50] : memref<16xi32, #tpu.memory_space<smem>>
        %c8_i32_34 = arith.constant 8 : i32
        %c0_i32_35 = arith.constant 0 : i32
        %52 = arith.cmpi eq, %c8_i32_34, %c0_i32_35 : i32
        %c1_i32_36 = arith.constant 1 : i32
        %53 = arith.select %52, %c1_i32_36, %c8_i32_34 : i32
        %54 = arith.remsi %48, %53 : i32
        %c0_i32_37 = arith.constant 0 : i32
        %55 = arith.cmpi ne, %54, %c0_i32_37 : i32
        %c0_i32_38 = arith.constant 0 : i32
        %56 = arith.cmpi slt, %54, %c0_i32_38 : i32
        %c0_i32_39 = arith.constant 0 : i32
        %57 = arith.cmpi slt, %53, %c0_i32_39 : i32
        %58 = arith.xori %56, %57 : i1
        %59 = arith.andi %58, %55 : i1
        %60 = arith.addi %54, %53 : i32
        %61 = arith.select %59, %60, %54 : i32
        %c0_i32_40 = arith.constant 0 : i32
        %62 = tpu.memref_slice %arg3[%51, %c0_i32_40] : memref<64x32xf32, #tpu.memory_space<any>> -> memref<1x32xf32, #tpu.memory_space<any>>
        %c0_i32_41 = arith.constant 0 : i32
        %63 = tpu.memref_slice %arg7[%48, %c0_i32_41] : memref<8x32xf32, #tpu.memory_space<vmem>> -> memref<1x32xf32, #tpu.memory_space<vmem>>
        %64 = tpu.memref_slice %arg8[%61] : memref<8x!tpu.dma_semaphore, #tpu.memory_space<semaphore_mem>> -> memref<1x!tpu.dma_semaphore, #tpu.memory_space<semaphore_mem>>
        %65 = tpu.memref_squeeze %64 : memref<1x!tpu.dma_semaphore, #tpu.memory_space<semaphore_mem>> -> memref<!tpu.dma_semaphore, #tpu.memory_space<semaphore_mem>>
        tpu.enqueue_dma source(%62 : memref<1x32xf32, #tpu.memory_space<any>>) target(%63 : memref<1x32xf32, #tpu.memory_space<vmem>>) target_semaphore(%65 : memref<!tpu.dma_semaphore, #tpu.memory_space<semaphore_mem>>)
      } else {
      }
    }
    %c8_i32_5 = arith.constant 8 : i32
    %c0 = arith.constant 0 : index
    %c0_6 = arith.constant 0 : index
    %3 = vector.load %arg2[%c0, %c0_6] : memref<8x1xi32, #tpu.memory_space<vmem>>, vector<8x1xi32>
    %c0_7 = arith.constant 0 : index
    %c0_8 = arith.constant 0 : index
    %4 = vector.load %arg4[%c0_7, %c0_8] : memref<3x32xf32, #tpu.memory_space<vmem>>, vector<1x32xf32>
    %c1 = arith.constant 1 : index
    %c0_9 = arith.constant 0 : index
    %5 = vector.load %arg4[%c1, %c0_9] : memref<3x32xf32, #tpu.memory_space<vmem>>, vector<1x32xf32>
    %c2 = arith.constant 2 : index
    %c0_10 = arith.constant 0 : index
    %6 = vector.load %arg4[%c2, %c0_10] : memref<3x32xf32, #tpu.memory_space<vmem>>, vector<1x32xf32>
    %c0_i32_11 = arith.constant 0 : i32
    %7 = vector.broadcast %c0_i32_11 : i32 to vector<8x1xi32>
    %8 = arith.cmpi eq, %3, %7 : vector<8x1xi32>
    %c1_i32_12 = arith.constant 1 : i32
    %9 = vector.broadcast %c1_i32_12 : i32 to vector<8x1xi32>
    %10 = arith.cmpi eq, %3, %9 : vector<8x1xi32>
    %11 = vector.shape_cast %10 : vector<8x1xi1> to vector<8x1xi1>
    %12 = vector.broadcast %11 : vector<8x1xi1> to vector<8x32xi1>
    %13 = vector.shape_cast %5 : vector<1x32xf32> to vector<1x32xf32>
    %14 = vector.broadcast %13 : vector<1x32xf32> to vector<8x32xf32>
    %15 = vector.shape_cast %6 : vector<1x32xf32> to vector<1x32xf32>
    %16 = vector.broadcast %15 : vector<1x32xf32> to vector<8x32xf32>
    %17 = arith.select %12, %14, %16 : vector<8x32xi1>, vector<8x32xf32>
    %18 = vector.shape_cast %8 : vector<8x1xi1> to vector<8x1xi1>
    %19 = vector.broadcast %18 : vector<8x1xi1> to vector<8x32xi1>
    %20 = vector.shape_cast %4 : vector<1x32xf32> to vector<1x32xf32>
    %21 = vector.broadcast %20 : vector<1x32xf32> to vector<8x32xf32>
    %22 = arith.select %19, %21, %17 : vector<8x32xi1>, vector<8x32xf32>
    %c0_13 = arith.constant 0 : index
    %c0_14 = arith.constant 0 : index
    %23 = vector.load %arg7[%c0_13, %c0_14] : memref<8x32xf32, #tpu.memory_space<vmem>>, vector<8x32xf32>
    %c0_15 = arith.constant 0 : index
    %c0_16 = arith.constant 0 : index
    %24 = vector.load %arg5[%c0_15, %c0_16] : memref<8x32xf32, #tpu.memory_space<vmem>>, vector<8x32xf32>
    %25 = arith.addf %23, %24 : vector<8x32xf32>
    %26 = arith.addf %25, %22 : vector<8x32xf32>
    %c0_17 = arith.constant 0 : index
    %c0_18 = arith.constant 0 : index
    %27 = vector.load %arg6[%c0_17, %c0_18] : memref<8x32xf32, #tpu.memory_space<vmem>>, vector<8x32xf32>
    tpu.vector_store %arg6[%c0_17, %c0_18], %26 {strides = array<i32>} : memref<8x32xf32, #tpu.memory_space<vmem>>, vector<8x32xf32>,
    return
  }
  func.func @transform_0(%arg0: i32, %arg1: memref<16xi32, #tpu.memory_space<smem>>) -> (i32, i32) {
    %c0_i32 = arith.constant 0 : i32
    %c0_i32_0 = arith.constant 0 : i32
    return %arg0, %c0_i32 : i32, i32
  }
  func.func @transform_2(%arg0: i32, %arg1: memref<16xi32, #tpu.memory_space<smem>>) -> (i32, i32) {
    %c0_i32 = arith.constant 0 : i32
    %c0_i32_0 = arith.constant 0 : i32
    %c0_i32_1 = arith.constant 0 : i32
    return %c0_i32, %c0_i32_0 : i32, i32
  }
  func.func @transform_3(%arg0: i32, %arg1: memref<16xi32, #tpu.memory_space<smem>>) -> (i32, i32) {
    %c1_i32 = arith.constant 1 : i32
    %c0_i32 = arith.constant 0 : i32
    %0 = arith.cmpi eq, %c1_i32, %c0_i32 : i32
    %c1_i32_0 = arith.constant 1 : i32
    %1 = arith.select %0, %c1_i32_0, %c1_i32 : i32
    %2 = arith.remsi %arg0, %1 : i32
    %c0_i32_1 = arith.constant 0 : i32
    %3 = arith.cmpi ne, %2, %c0_i32_1 : i32
    %c0_i32_2 = arith.constant 0 : i32
    %4 = arith.cmpi slt, %2, %c0_i32_2 : i32
    %c0_i32_3 = arith.constant 0 : i32
    %5 = arith.cmpi slt, %1, %c0_i32_3 : i32
    %6 = arith.xori %4, %5 : i1
    %7 = arith.andi %6, %3 : i1
    %8 = arith.addi %2, %1 : i32
    %9 = arith.select %7, %8, %2 : i32
    %c0_i32_4 = arith.constant 0 : i32
    %c0_i32_5 = arith.constant 0 : i32
    return %9, %c0_i32_4 : i32, i32
  }
  func.func @transform_4(%arg0: i32, %arg1: memref<16xi32, #tpu.memory_space<smem>>) -> (i32, i32) {
    %c0_i32 = arith.constant 0 : i32
    %c0_i32_0 = arith.constant 0 : i32
    return %arg0, %c0_i32 : i32, i32
  }
}

</mosaic_0001>

<llo_original>
// kernel: tpu_custom_call.1
$region0: #{tpu_custom_call.1}
  #allocation0 [shape = 'u32[]', space=smem, size = 0x4, offset = 0x4, fixed_abs, tag = 'smem constant byte address 0x4 - core index']
  #allocation1 [shape = 'u32[144,128]{1,0:T(1,128)}', space=vmem, size = 0x12000, scoped, tag = 'internal scratch']
  #allocation2 [shape = 'f32[8,32]{1,0:T(8,128)}', space=vmem, size = 0x1000, scoped, tag = 'scratch operand']
  #allocation3 [shape = 's32[8]{0}', space=sflag, size = 0x20, scoped, tag = 'scratch operand']
  #allocation4 [shape = 's32[1]{0}', space=sflag, size = 0x4, scoped, tag = 'scoped memory for tpu_custom_call.1']
  #allocation5 [shape = 'u8[512]{0}', space=smem, size = 0x200, scoped, tag = 'prefetched SMEM operand 0']
  #allocation8 [shape = 's32[]', space=sflag, size = 0x4, offset = 0, fixed_abs, tag = 'sflag constant byte address 0x0 - dummy sync flag']
  #allocation9 [shape = 's32[]', space=sflag, size = 0x4, offset = 0, fixed_abs, tag = 'sflag constant byte address 0x0 - dummy sync flag']
  %s0 = inlined_call_operand.vmem [shape: s32[16], index: 0, kind: input, shape index: {}]
  %s1 = inlined_call_operand.vmem [shape: s32[16,1], index: 1, kind: input, shape index: {}]
  %s2 = inlined_call_operand.vmem [shape: f32[64,32], index: 2, kind: input, shape index: {}]
  %s3 = inlined_call_operand.vmem [shape: f32[3,32], index: 3, kind: input, shape index: {}]
  %s4 = inlined_call_operand.vmem [shape: f32[8,32], index: 4, kind: input, shape index: {}]
  %s5 = inlined_call_operand.hbm [shape: f32[16,32], index: 5, kind: output, shape index: {}]
  %s6 = sld [smem:[#allocation0]]
  $region123: #{tpu_custom_call.1} parent=0
    _
  %s8 = ssub.s32 1, %s6
  %s9 = scalar_select 0, %s8, %s6
  %s10 = sshll.u32 %s0, 4
  %s11 = int_to_ptr.vmem [resolvable:$true] %s10
  %13 = dma.vmem_to_smem %s11, 16, [#allocation5], [#allocation4]
  %14 = dma.done [#allocation4], 16
  %15 = sfence
  $region1: #{tpu_custom_call.1} parent=0
    #allocation6 [shape = 'u8[8192]{0}', space=vmem, size = 0x2000, scoped, tag = 'output window, operand 0']
    #allocation7 [shape = 's32[2]{0}', space=sflag, size = 0x8, scoped, tag = 'scoped memory for tpu_custom_call.1']
    %16 = vsyncpa [#allocation7], 0
    %s17 = scalar_lea.sflag [#allocation7], 1
    %18 = vsyncpa %s17, 0
    loop: start=0, step=1, limit=4
    $region2: #{tpu_custom_call.1} parent=1 // loop_pre_header
      _
    $region3: #{tpu_custom_call.1} parent=1 // loop_header
      %s20 = sphi 0, %s24
      %p21 = scmp.ge.s32.totalorder %s20, 4
      %s30 = sphi 0, %s32
      %s33 = sphi 0, %s30
      %s34 = sphi 0, %s33
      %s50 = sphi 0, %s34
      %s54 = sphi 0, %s54
      %s56 = sphi 0, %s54
      %s57 = sphi 0, %s56
      %s71 = sphi 0, %s57
      %s75 = sphi 0, %s75
      %s77 = sphi 0, %s75
      %s78 = sphi 0, %s77
      %s92 = sphi 0, %s78
      %s98 = sphi 0, %s100
      %s101 = sphi 0, %s98
      %s102 = sphi 0, %s101
      %s118 = sphi 0, %s102
    $region4: #{tpu_custom_call.1} parent=1 // loop_header_branch
      %23 = sbr.rel (%p21) target = $region8
    $region5: #{tpu_custom_call.1} parent=1 // loop_body
      %s25 = ssub.s32 %s20, 1
      %s26 = ssub.s32 %s20, 2
      %s27 = sadd.s32 %s20, 1
      %s28 = ssub.s32 %s20, %s27
      %p29 = scmp.eq.s32.totalorder %s28, 0
      %s31 = sadd.s32 %s30, 1
      %s32 = scalar_select %p29, %s30, %s31
      %p35 = pneg %p29
      %p36 = scmp.eq.s32.totalorder %s20, 1
      %p37 = por %p35, %p36
      %p38 = scmp.ne.s32.totalorder %s30, %s33
      %p39 = scmp.eq.s32.totalorder %s20, 0
      %p40 = por %p38, %p39
      %p41 = scmp.ne.s32.totalorder %s30, %s33
      %p42 = scmp.eq.s32.totalorder %s25, 1
      %p43 = por %p41, %p42
      %p44 = scmp.ne.s32.totalorder %s33, %s34
      %p45 = scmp.eq.s32.totalorder %s25, 0
      %p46 = por %p44, %p45
      %p47 = scmp.ne.s32.totalorder %s33, %s34
      %p48 = scmp.eq.s32.totalorder %s26, 1
      %p49 = por %p47, %p48
      %p51 = scmp.ne.s32.totalorder %s34, %s50
      %p52 = scmp.eq.s32.totalorder %s26, 0
      %p53 = por %p51, %p52
      %s55 = sadd.s32 %s54, 1
      %p58 = scmp.eq.s32.totalorder %s20, 1
      %p59 = scmp.ne.s32.totalorder %s54, %s56
      %p60 = scmp.eq.s32.totalorder %s20, 0
      %p61 = por %p59, %p60
      %p62 = scmp.ne.s32.totalorder %s54, %s56
      %p63 = scmp.eq.s32.totalorder %s25, 1
      %p64 = por %p62, %p63
      %p65 = scmp.ne.s32.totalorder %s56, %s57
      %p66 = scmp.eq.s32.totalorder %s25, 0
      %p67 = por %p65, %p66
      %p68 = scmp.ne.s32.totalorder %s56, %s57
      %p69 = scmp.eq.s32.totalorder %s26, 1
      %p70 = por %p68, %p69
      %p72 = scmp.ne.s32.totalorder %s57, %s71
      %p73 = scmp.eq.s32.totalorder %s26, 0
      %p74 = por %p72, %p73
      %s76 = sadd.s32 %s75, 1
      %p79 = scmp.eq.s32.totalorder %s20, 1
      %p80 = scmp.ne.s32.totalorder %s75, %s77
      %p81 = scmp.eq.s32.totalorder %s20, 0
      %p82 = por %p80, %p81
      %p83 = scmp.ne.s32.totalorder %s75, %s77
      %p84 = scmp.eq.s32.totalorder %s25, 1
      %p85 = por %p83, %p84
      %p86 = scmp.ne.s32.totalorder %s77, %s78
      %p87 = scmp.eq.s32.totalorder %s25, 0
      %p88 = por %p86, %p87
      %p89 = scmp.ne.s32.totalorder %s77, %s78
      %p90 = scmp.eq.s32.totalorder %s26, 1
      %p91 = por %p89, %p90
      %p93 = scmp.ne.s32.totalorder %s78, %s92
      %p94 = scmp.eq.s32.totalorder %s26, 0
      %p95 = por %p93, %p94
      %s96 = ssub.s32 %s20, %s27
      %p97 = scmp.eq.s32.totalorder %s96, 0
      %s99 = sadd.s32 %s98, 1
      %s100 = scalar_select %p97, %s98, %s99
      %p103 = pneg %p97
      %p104 = scmp.eq.s32.totalorder %s20, 1
      %p105 = por %p103, %p104
      %p106 = scmp.ne.s32.totalorder %s98, %s101
      %p107 = scmp.eq.s32.totalorder %s20, 0
      %p108 = por %p106, %p107
      %p109 = scmp.ne.s32.totalorder %s98, %s101
      %p110 = scmp.eq.s32.totalorder %s25, 1
      %p111 = por %p109, %p110
      %p112 = scmp.ne.s32.totalorder %s101, %s102
      %p113 = scmp.eq.s32.totalorder %s25, 0
      %p114 = por %p112, %p113
      %p115 = scmp.ne.s32.totalorder %s101, %s102
      %p116 = scmp.eq.s32.totalorder %s26, 1
      %p117 = por %p115, %p116
      %p119 = scmp.ne.s32.totalorder %s102, %s118
      %p120 = scmp.eq.s32.totalorder %s26, 0
      %p121 = por %p119, %p120
      %p122 = scmp.le.s32.totalorder 1, %s20
      %p123 = scmp.lt.s32.totalorder %s20, 3
      %p124 = pnand %p122, %p123
      %p125 = pneg %p124
      // Predicated region
      $region9: #{tpu_custom_call.1} parent=5 // pred_check
        _
      $region10: #{tpu_custom_call.1} parent=5 // pred_check_branch
        %127 = sbr.rel (%p124) target = $region12
      $region11: #{tpu_custom_call.1} parent=5 // pred_region
        %s128 = ssub.s32 %s20, 1
        // Predicated region
        $region13: #{tpu_custom_call.1} parent=11 // pred_check
          %p129 = pneg %p67
        $region14: #{tpu_custom_call.1} parent=11 // pred_check_branch
          %131 = sbr.rel (%p129) target = $region16
        $region15: #{tpu_custom_call.1} parent=11 // pred_region
          _
        $region16: #{tpu_custom_call.1} parent=11 // pred_fallthru
          _
        // Predicated region
        $region17: #{tpu_custom_call.1} parent=11 // pred_check
          %p132 = pneg %p88
        $region18: #{tpu_custom_call.1} parent=11 // pred_check_branch
          %134 = sbr.rel (%p132) target = $region20
        $region19: #{tpu_custom_call.1} parent=11 // pred_region
          _
        $region20: #{tpu_custom_call.1} parent=11 // pred_fallthru
          _
      $region12: #{tpu_custom_call.1} parent=5 // pred_fallthru
        _
      %p135 = scmp.lt.s32.totalorder %s20, 2
      // Predicated region
      $region21: #{tpu_custom_call.1} parent=5 // pred_check
        %p136 = pneg %p135
      $region22: #{tpu_custom_call.1} parent=5 // pred_check_branch
        %138 = sbr.rel (%p136) target = $region24
      $region23: #{tpu_custom_call.1} parent=5 // pred_region
        // Predicated region
        $region25: #{tpu_custom_call.1} parent=23 // pred_check
          %p139 = pneg %p40
        $region26: #{tpu_custom_call.1} parent=23 // pred_check_branch
          %141 = sbr.rel (%p139) target = $region28
        $region27: #{tpu_custom_call.1} parent=23 // pred_region
          %p142 = scmp.lt.s32.totalorder %s20, 1
          %s143 = scalar_select %p142, %s20, 1
          %s144 = smul.addr %s143, 8
          %s145 = scalar_lea.vmem %s1, %s144
        $region28: #{tpu_custom_call.1} parent=23 // pred_fallthru
          _
      $region24: #{tpu_custom_call.1} parent=5 // pred_fallthru
        _
      %p146 = scmp.le.s32.totalorder 1, %s20
      %p147 = scmp.lt.s32.totalorder %s20, 3
      %p148 = pnand %p146, %p147
      %p149 = pneg %p148
      // Predicated region
      $region29: #{tpu_custom_call.1} parent=5 // pred_check
        _
      $region30: #{tpu_custom_call.1} parent=5 // pred_check_branch
        %151 = sbr.rel (%p148) target = $region32
      $region31: #{tpu_custom_call.1} parent=5 // pred_region
        %s152 = ssub.s32 %s20, 1
        %p153 = scmp.lt.s32.totalorder %s25, 1
        %s154 = scalar_select %p153, %s25, 1
        %s155 = smul.addr %s154, 8
        %s156 = scalar_lea.vmem %s1, %s155
        %p157 = pneg %p46
        %p158 = pneg %p43
        %p159 = pneg %p67
        %p160 = pneg %p64
        %p161 = pneg %p88
        %p162 = pneg %p85
        %p163 = pneg %p114
        %p164 = pneg %p111
        %s165 = sand.u32 %s101, 1
        %s166 = scalar_lea.sflag [#allocation7], %s165
        %s167 = sand.u32 %s101, 1
        %s168 = smul.addr %s167, 8
        %s169 = scalar_lea.vmem [#allocation6], %s168
        %p170 = scmp.lt.s32.totalorder %s25, 1
        %s171 = scalar_select %p170, %s25, 1
        %s172 = smul.addr %s171, 8
        %s173 = scalar_lea.vmem %s1, %s172
        %s174 = smul.u32 %s25, 8
        loop: start=0, step=1, limit=8
        $region33: #{tpu_custom_call.1} parent=31 // loop_pre_header
          _
        $region34: #{tpu_custom_call.1} parent=31 // loop_header
          %s176 = sphi 0, %s180
          %p177 = scmp.ge.s32.totalorder %s176, 8
        $region35: #{tpu_custom_call.1} parent=31 // loop_header_branch
          %179 = sbr.rel (%p177) target = $region39
        $region36: #{tpu_custom_call.1} parent=31 // loop_body
          %s181 = sadd.s32 %s174, %s176
          %s182 = sld [smem:[#allocation5 + %s181]]
          %p183 = scmp.lt.s32.totalorder %s176, 0
          %s184 = ssub.s32 0, %s176
          %s185 = scalar_select %p183, %s184, %s176
          %s186 = sand.u32 %s185, 7
          %s187 = ssub.s32 0, %s186
          %s188 = scalar_select %p183, %s187, %s186
          %p189 = scmp.ne.s32.totalorder %s188, 0
          %p190 = scmp.lt.s32.totalorder %s188, 0
          %p191 = pnand %p190, %p189
          %p192 = pneg %p191
          %s193 = sadd.s32 %s188, 8
          %s194 = scalar_select %p192, %s193, %s188
          %s195 = scalar_lea.vmem %s2, %s182
          %s196 = scalar_lea.vmem [#allocation2], %s176
          %s197 = scalar_lea.sflag [#allocation3], %s194
          %p199 = scmp.lt.u32.totalorder 1, 8
          %p200 = pneg %p199
          // Predicated region
          $region40: #{tpu_custom_call.1} parent=36 // pred_check
            _
          $region41: #{tpu_custom_call.1} parent=36 // pred_check_branch
            %202 = sbr.rel (%p199) target = $region43
          $region42: #{tpu_custom_call.1} parent=36 // pred_region
            %s217 = sand.u32 1, 7
            %p218 = scmp.eq.s32.totalorder %s217, 0
            %p219 = pneg %p218
            // Predicated region
            $region55: #{tpu_custom_call.1} parent=42 // pred_check
              _
            $region56: #{tpu_custom_call.1} parent=42 // pred_check_branch
              %221 = sbr.rel (%p218) target = $region58
            $region57: #{tpu_custom_call.1} parent=42 // pred_region
              %s222 = sand.u32 1, 7
              %s223 = ssub.s32 1, %s222
              %s224 = scalar_lea.vmem %s195, %s223
              %s225 = ssub.s32 1, %s222
              %s226 = scalar_lea.vmem %s196, %s225 [#allocation2]
              %s227 = sshllo.u32 0, %s222
              loop: start=0, step=1, limit=1
              $region59: #{tpu_custom_call.1} parent=57 // loop_pre_header
                _
              $region60: #{tpu_custom_call.1} parent=57 // loop_header
                %s229 = sphi 0, %s233
                %p230 = scmp.ge.s32.totalorder %s229, 1
                %s234 = sphi %s224, %s224
                %s235 = sphi %s226, %s226
              $region61: #{tpu_custom_call.1} parent=57 // loop_header_branch
                %232 = sbr.rel (%p230) target = $region65
              $region62: #{tpu_custom_call.1} parent=57 // loop_body
                %v236 = vld [vmem:[%s234] sm:%s227]
                %237 = vst [vmem:[%s235] sm:%s227] %v236
              $region63: #{tpu_custom_call.1} parent=57 // loop_footer
                %s233 = sadd.s32 1, %s229
              $region64: #{tpu_custom_call.1} parent=57 // loop_footer_branch
                %228 = sbr.rel target = $region60
              $region65: #{tpu_custom_call.1} parent=57 // loop_exit
                _
            $region58: #{tpu_custom_call.1} parent=42 // pred_fallthru
              _
          $region43: #{tpu_custom_call.1} parent=36 // pred_fallthru
            _
          // Predicated region
          $region44: #{tpu_custom_call.1} parent=36 // pred_check
            %p203 = pneg %p199
          $region45: #{tpu_custom_call.1} parent=36 // pred_check_branch
            %205 = sbr.rel (%p203) target = $region47
          $region46: #{tpu_custom_call.1} parent=36 // pred_region
            %s206 = sshllo.u32 0, 1
            loop: start=0, step=1, limit=1
            $region48: #{tpu_custom_call.1} parent=46 // loop_pre_header
              _
            $region49: #{tpu_custom_call.1} parent=46 // loop_header
              %s208 = sphi 0, %s212
              %p209 = scmp.ge.s32.totalorder %s208, 1
              %s213 = sphi %s195, %s195
              %s214 = sphi %s196, %s196
            $region50: #{tpu_custom_call.1} parent=46 // loop_header_branch
              %211 = sbr.rel (%p209) target = $region54
            $region51: #{tpu_custom_call.1} parent=46 // loop_body
              %v215 = vld [vmem:[%s213] sm:%s206]
              %216 = vst [vmem:[%s214] sm:%s206] %v215
            $region52: #{tpu_custom_call.1} parent=46 // loop_footer
              %s212 = sadd.s32 1, %s208
            $region53: #{tpu_custom_call.1} parent=46 // loop_footer_branch
              %207 = sbr.rel target = $region49
            $region54: #{tpu_custom_call.1} parent=46 // loop_exit
              _
          $region47: #{tpu_custom_call.1} parent=36 // pred_fallthru
            _
          // Predicated region
          $region66: #{tpu_custom_call.1} parent=36 // pred_check
            _
          $region67: #{tpu_custom_call.1} parent=36 // pred_check_branch
            %240 = sbr.rel (0) target = $region69
          $region68: #{tpu_custom_call.1} parent=36 // pred_region
            %241 = vsyncadd %s197, 16
          $region69: #{tpu_custom_call.1} parent=36 // pred_fallthru
            _
        $region37: #{tpu_custom_call.1} parent=31 // loop_footer
          %s180 = sadd.s32 1, %s176
        $region38: #{tpu_custom_call.1} parent=31 // loop_footer_branch
          %175 = sbr.rel target = $region34
        $region39: #{tpu_custom_call.1} parent=31 // loop_exit
          _
        loop: start=0, step=1, limit=8
        $region70: #{tpu_custom_call.1} parent=31 // loop_pre_header
          _
        $region71: #{tpu_custom_call.1} parent=31 // loop_header
          %s243 = sphi 0, %s247
          %p244 = scmp.ge.s32.totalorder %s243, 8
        $region72: #{tpu_custom_call.1} parent=31 // loop_header_branch
          %246 = sbr.rel (%p244) target = $region76
        $region73: #{tpu_custom_call.1} parent=31 // loop_body
          %p248 = scmp.lt.s32.totalorder %s243, 0
          %s249 = ssub.s32 0, %s243
          %s250 = scalar_select %p248, %s249, %s243
          %s251 = sand.u32 %s250, 7
          %s252 = ssub.s32 0, %s251
          %s253 = scalar_select %p248, %s252, %s251
          %p254 = scmp.ne.s32.totalorder %s253, 0
          %p255 = scmp.lt.s32.totalorder %s253, 0
          %p256 = pnand %p255, %p254
          %p257 = pneg %p256
          %s258 = sadd.s32 %s253, 8
          %s259 = scalar_select %p257, %s258, %s253
          %s260 = scalar_lea.sflag [#allocation3], %s259
          %s261 = smul.u32 1, 1
          %s262 = sshll.u32 %s261, 4
          %263 = dma.done %s260, %s262
          %s264 = sadd.s32 %s243, 8
          %p265 = scmp.lt.s32.totalorder %s264, 8
          // Predicated region
          $region77: #{tpu_custom_call.1} parent=73 // pred_check
            %p266 = pneg %p265
          $region78: #{tpu_custom_call.1} parent=73 // pred_check_branch
            %268 = sbr.rel (%p266) target = $region80
          $region79: #{tpu_custom_call.1} parent=73 // pred_region
            %s269 = sadd.s32 %s174, %s264
            %s270 = sld [smem:[#allocation5 + %s269]]
            %p271 = scmp.lt.s32.totalorder %s264, 0
            %s272 = ssub.s32 0, %s264
            %s273 = scalar_select %p271, %s272, %s264
            %s274 = sand.u32 %s273, 7
            %s275 = ssub.s32 0, %s274
            %s276 = scalar_select %p271, %s275, %s274
            %p277 = scmp.ne.s32.totalorder %s276, 0
            %p278 = scmp.lt.s32.totalorder %s276, 0
            %p279 = pnand %p278, %p277
            %p280 = pneg %p279
            %s281 = sadd.s32 %s276, 8
            %s282 = scalar_select %p280, %s281, %s276
            %s283 = scalar_lea.vmem %s2, %s270
            %s284 = scalar_lea.vmem [#allocation2], %s264
            %s285 = scalar_lea.sflag [#allocation3], %s282
            %p287 = scmp.lt.u32.totalorder 1, 8
            %p288 = pneg %p287
            // Predicated region
            $region81: #{tpu_custom_call.1} parent=79 // pred_check
              _
            $region82: #{tpu_custom_call.1} parent=79 // pred_check_branch
              %290 = sbr.rel (%p287) target = $region84
            $region83: #{tpu_custom_call.1} parent=79 // pred_region
              %s305 = sand.u32 1, 7
              %p306 = scmp.eq.s32.totalorder %s305, 0
              %p307 = pneg %p306
              // Predicated region
              $region96: #{tpu_custom_call.1} parent=83 // pred_check
                _
              $region97: #{tpu_custom_call.1} parent=83 // pred_check_branch
                %309 = sbr.rel (%p306) target = $region99
              $region98: #{tpu_custom_call.1} parent=83 // pred_region
                %s310 = sand.u32 1, 7
                %s311 = ssub.s32 1, %s310
                %s312 = scalar_lea.vmem %s283, %s311
                %s313 = ssub.s32 1, %s310
                %s314 = scalar_lea.vmem %s284, %s313 [#allocation2]
                %s315 = sshllo.u32 0, %s310
                loop: start=0, step=1, limit=1
                $region100: #{tpu_custom_call.1} parent=98 // loop_pre_header
                  _
                $region101: #{tpu_custom_call.1} parent=98 // loop_header
                  %s317 = sphi 0, %s321
                  %p318 = scmp.ge.s32.totalorder %s317, 1
                  %s322 = sphi %s312, %s312
                  %s323 = sphi %s314, %s314
                $region102: #{tpu_custom_call.1} parent=98 // loop_header_branch
                  %320 = sbr.rel (%p318) target = $region106
                $region103: #{tpu_custom_call.1} parent=98 // loop_body
                  %v324 = vld [vmem:[%s322] sm:%s315]
                  %325 = vst [vmem:[%s323] sm:%s315] %v324
                $region104: #{tpu_custom_call.1} parent=98 // loop_footer
                  %s321 = sadd.s32 1, %s317
                $region105: #{tpu_custom_call.1} parent=98 // loop_footer_branch
                  %316 = sbr.rel target = $region101
                $region106: #{tpu_custom_call.1} parent=98 // loop_exit
                  _
              $region99: #{tpu_custom_call.1} parent=83 // pred_fallthru
                _
            $region84: #{tpu_custom_call.1} parent=79 // pred_fallthru
              _
            // Predicated region
            $region85: #{tpu_custom_call.1} parent=79 // pred_check
              %p291 = pneg %p287
            $region86: #{tpu_custom_call.1} parent=79 // pred_check_branch
              %293 = sbr.rel (%p291) target = $region88
            $region87: #{tpu_custom_call.1} parent=79 // pred_region
              %s294 = sshllo.u32 0, 1
              loop: start=0, step=1, limit=1
              $region89: #{tpu_custom_call.1} parent=87 // loop_pre_header
                _
              $region90: #{tpu_custom_call.1} parent=87 // loop_header
                %s296 = sphi 0, %s300
                %p297 = scmp.ge.s32.totalorder %s296, 1
                %s301 = sphi %s283, %s283
                %s302 = sphi %s284, %s284
              $region91: #{tpu_custom_call.1} parent=87 // loop_header_branch
                %299 = sbr.rel (%p297) target = $region95
              $region92: #{tpu_custom_call.1} parent=87 // loop_body
                %v303 = vld [vmem:[%s301] sm:%s294]
                %304 = vst [vmem:[%s302] sm:%s294] %v303
              $region93: #{tpu_custom_call.1} parent=87 // loop_footer
                %s300 = sadd.s32 1, %s296
              $region94: #{tpu_custom_call.1} parent=87 // loop_footer_branch
                %295 = sbr.rel target = $region90
              $region95: #{tpu_custom_call.1} parent=87 // loop_exit
                _
            $region88: #{tpu_custom_call.1} parent=79 // pred_fallthru
              _
            // Predicated region
            $region107: #{tpu_custom_call.1} parent=79 // pred_check
              _
            $region108: #{tpu_custom_call.1} parent=79 // pred_check_branch
              %328 = sbr.rel (0) target = $region110
            $region109: #{tpu_custom_call.1} parent=79 // pred_region
              %329 = vsyncadd %s285, 16
            $region110: #{tpu_custom_call.1} parent=79 // pred_fallthru
              _
          $region80: #{tpu_custom_call.1} parent=73 // pred_fallthru
            _
        $region74: #{tpu_custom_call.1} parent=31 // loop_footer
          %s247 = sadd.s32 1, %s243
        $region75: #{tpu_custom_call.1} parent=31 // loop_footer_branch
          %242 = sbr.rel target = $region71
        $region76: #{tpu_custom_call.1} parent=31 // loop_exit
          _
        %v330 = vld [vmem:[%s173] sm:$0xff]
        %v331 = vld [vmem:[%s3] sm:$0x1]
        %v332 = vld [vmem:[%s3 + $0x1] sm:$0x1]
        %v333 = vld [vmem:[%s3 + $0x2] sm:$0x1]
        %vm334 = vcmp.eq.s32.totalorder %v330, 0
        %vm335 = vcmp.eq.s32.totalorder %v330, 1
        %v336 = vsel %vm335, 1, 0
        %337 = vset.pattern.permute.xlu0 0
        %338 = vperm.xlu0 %337, %v336
        %v339 = vpop.permute.xlu0 %338
        %vm340 = vcmp.eq.s32.totalorder %v339, 1
        %v341 = vlaneseq
        %v342 = vshrl.u32 %v341, 7
        %v343 = vsub.s32 0, %v342
        %v344 = vrot.slane %v332, %v343
        %v345 = vlaneseq
        %v346 = vshrl.u32 %v345, 7
        %v347 = vsub.s32 0, %v346
        %v348 = vrot.slane %v333, %v347
        %v349 = vsel %vm340, %v344, %v348
        %v350 = vsel %vm334, 1, 0
        %351 = vset.pattern.permute.xlu0 0
        %352 = vperm.xlu0 %351, %v350
        %v353 = vpop.permute.xlu0 %352
        %vm354 = vcmp.eq.s32.totalorder %v353, 1
        %v355 = vlaneseq
        %v356 = vshrl.u32 %v355, 7
        %v357 = vsub.s32 0, %v356
        %v358 = vrot.slane %v331, %v357
        %v359 = vsel %vm354, %v358, %v349
        %v360 = vld [vmem:[#allocation2] sm:$0xff]
        %v361 = vld [vmem:[%s4] sm:$0xff]
        %v362 = vadd.f32 %v360, %v361
        %v363 = vadd.f32 %v362, %v359
        %vm364 = vcmask 261120
        %365 = vst.msk [vmem:[%s169] sm:$0xff] %vm364, %v363
        %s366 = sand.u32 %s101, 1
        %s367 = scalar_lea.sflag [#allocation7], %s366
        %s368 = sand.u32 %s101, 1
        %s369 = smul.addr %s368, 8
        %s370 = scalar_lea.vmem [#allocation6], %s369
        // Predicated region
        $region111: #{tpu_custom_call.1} parent=31 // pred_check
          %p371 = pneg %p111
        $region112: #{tpu_custom_call.1} parent=31 // pred_check_branch
          %373 = sbr.rel (%p371) target = $region114
        $region113: #{tpu_custom_call.1} parent=31 // pred_region
          %s375 = ssub.s32 128, 128
          %376 = vsyncadd %s367, %s375
          %s377 = smul.addr %s25, 128
          %s378 = scalar_lea.hbm %s5, %s377
          %s380 = sshll.u32 %s370, 4
          %s381 = int_to_ptr.vmem [resolvable:$true] %s380
          %383 = dma.vmem_to_hbm [thread:$0]  %s381, 128, %s378, %s367
        $region114: #{tpu_custom_call.1} parent=31 // pred_fallthru
          _
      $region32: #{tpu_custom_call.1} parent=5 // pred_fallthru
        _
      %p384 = scmp.le.s32.totalorder 2, %s20
      // Predicated region
      $region115: #{tpu_custom_call.1} parent=5 // pred_check
        %p385 = pneg %p384
      $region116: #{tpu_custom_call.1} parent=5 // pred_check_branch
        %387 = sbr.rel (%p385) target = $region118
      $region117: #{tpu_custom_call.1} parent=5 // pred_region
        %s388 = ssub.s32 %s20, 2
        // Predicated region
        $region119: #{tpu_custom_call.1} parent=117 // pred_check
          %p389 = pneg %p117
        $region120: #{tpu_custom_call.1} parent=117 // pred_check_branch
          %391 = sbr.rel (%p389) target = $region122
        $region121: #{tpu_custom_call.1} parent=117 // pred_region
          %s392 = sand.u32 %s102, 1
          %s393 = scalar_lea.sflag [#allocation7], %s392
          %s394 = sand.u32 %s102, 1
          %s395 = smul.addr %s394, 8
          %s396 = scalar_lea.vmem [#allocation6], %s395
          %397 = dma.done %s393, 128
        $region122: #{tpu_custom_call.1} parent=117 // pred_fallthru
          _
      $region118: #{tpu_custom_call.1} parent=5 // pred_fallthru
        _
    $region6: #{tpu_custom_call.1} parent=1 // loop_footer
      %s24 = sadd.s32 1, %s20
    $region7: #{tpu_custom_call.1} parent=1 // loop_footer_branch
      %19 = sbr.rel target = $region3
    $region8: #{tpu_custom_call.1} parent=1 // loop_exit
      _
    %398 = vsyncpa [#allocation7], 1
    %s399 = scalar_lea.sflag [#allocation7], 1
    %400 = vsyncpa %s399, 1
  %401 = vsyncmov [#allocation3]
  %s402 = vpop.sfrf %401
  %p403 = scmp.eq.s32.totalorder %s402, 0
  %p404 = pneg %p403
  %406 = shalt.err (%p404)
  %s407 = scalar_lea.sflag [#allocation3], 1
  %408 = vsyncmov %s407
  %s409 = vpop.sfrf %408
  %p410 = scmp.eq.s32.totalorder %s409, 0
  %p411 = pneg %p410
  %413 = shalt.err (%p411)
  %s414 = scalar_lea.sflag [#allocation3], 2
  %415 = vsyncmov %s414
  %s416 = vpop.sfrf %415
  %p417 = scmp.eq.s32.totalorder %s416, 0
  %p418 = pneg %p417
  %420 = shalt.err (%p418)
  %s421 = scalar_lea.sflag [#allocation3], 3
  %422 = vsyncmov %s421
  %s423 = vpop.sfrf %422
  %p424 = scmp.eq.s32.totalorder %s423, 0
  %p425 = pneg %p424
  %427 = shalt.err (%p425)
  %s428 = scalar_lea.sflag [#allocation3], 4
  %429 = vsyncmov %s428
  %s430 = vpop.sfrf %429
  %p431 = scmp.eq.s32.totalorder %s430, 0
  %p432 = pneg %p431
  %434 = shalt.err (%p432)
  %s435 = scalar_lea.sflag [#allocation3], 5
  %436 = vsyncmov %s435
  %s437 = vpop.sfrf %436
  %p438 = scmp.eq.s32.totalorder %s437, 0
  %p439 = pneg %p438
  %441 = shalt.err (%p439)
  %s442 = scalar_lea.sflag [#allocation3], 6
  %443 = vsyncmov %s442
  %s444 = vpop.sfrf %443
  %p445 = scmp.eq.s32.totalorder %s444, 0
  %p446 = pneg %p445
  %448 = shalt.err (%p446)
  %s449 = scalar_lea.sflag [#allocation3], 7
  %450 = vsyncmov %s449
  %s451 = vpop.sfrf %450
  %p452 = scmp.eq.s32.totalorder %s451, 0
  %p453 = pneg %p452
  %455 = shalt.err (%p453)

</llo_original>
